<compile_context>
chip_gen: v7x
topology: tpu7x:2x2x1
jax: 0.10.0
libtpu: 0.0.40
codegen_flags: <defaults>
</compile_context>

<pallas_src>
import functools

import jax
import jax.numpy as jnp
from jax import lax
from jax.experimental import pallas as pl
from jax.experimental.pallas import tpu as pltpu

KH, KW = 3, 3  # kernel_size=(3, 3)


def dsconv_kernel(xf_ref, dw_ref, b1_ref, pw_ref, b2_ref, o_ref, *, H, W):
    # xf_ref:  (Cin, (H+2)*W + 2)  row-padded, flattened, 1-elem guard each end
    # dw_ref:  (KH, KW, Cin, 1)    depthwise weights with BN1 scale folded in
    # b1_ref:  (Cin, 1)            folded BN1 bias
    # pw_ref:  (Cout, Cin)         pointwise weights with BN2 scale folded in
    # b2_ref:  (Cout, 1)           folded BN2 bias
    # o_ref:   (Cout, H*W)         lane-dense output (wrapper reshapes to NCHW)
    HW = H * W
    Cin = xf_ref.shape[0]
    Cout = o_ref.shape[0]

    # Column-boundary masks for the W-direction 'same' padding, built in-kernel
    # from a 2-D iota (no extra HBM input).  W is static, so % lowers cheaply.
    col = lax.broadcasted_iota(jnp.int32, (1, HW), 1) % W
    left_ok = col > 0            # kw = 0 tap valid
    right_ok = col < (W - 1)     # kw = 2 tap valid

    # --- depthwise 3x3 'same' conv: 9 shifted-window FMAs on the VPU --------
    # Window for tap (kh, kw) at output flat position p is xf[p + kh*W + kw].
    # Row padding is physical (zero rows); column padding is handled by
    # masking the kw=0 / kw=2 tap groups once at the end.
    acc_by_kw = []
    for kw in range(KW):
        a = None
        for kh in range(KH):
            start = kh * W + kw                                        # static
            win = xf_ref[:, pl.ds(start, HW)].astype(jnp.float32)      # (Cin, HW)
            term = win * dw_ref[kh, kw]                                # * (Cin, 1)
            a = term if a is None else a + term
        acc_by_kw.append(a)
    acc = (jnp.where(left_ok, acc_by_kw[0], 0.0)
           + acc_by_kw[1]
           + jnp.where(right_ok, acc_by_kw[2], 0.0))                   # (Cin, HW)

    # --- BN1 bias (scale already folded into dw) + ReLU ---------------------
    y = jnp.maximum(acc + b1_ref[...], 0.0)                            # (Cin, HW)

    # --- pointwise 1x1 conv --------------------------------------------------
    if Cin >= 64 and Cout >= 64:
        # Production-sized channels: bf16 MXU matmul fast path.
        out = jnp.dot(pw_ref[...].astype(jnp.bfloat16),
                      y.astype(jnp.bfloat16),
                      preferred_element_type=jnp.float32)              # (Cout, HW)
    else:
        # Tiny K/N: MXU would be nearly idle -- broadcast-FMA chain on the VPU.
        pw = pw_ref[...]                                               # (Cout, Cin)
        out = None
        for ci in range(Cin):
            term = pw[:, ci:ci + 1] * y[ci:ci + 1, :]                  # (Cout,1)*(1,HW)
            out = term if out is None else out + term

    # --- BN2 bias + ReLU, dense (>=128-lane, unmasked) store ----------------
    out = jnp.maximum(out + b2_ref[...], 0.0)
    o_ref[...] = out.astype(o_ref.dtype)


def dsconv_forward(x, dw_w, pw_w, bn1_params, bn2_params, eps=1e-5):
    """Fused DSConv forward.

    x:     (N, Cin, H, W)   NCHW, like the PyTorch module
    dw_w:  (Cin, KH, KW)    == depthwise.weight[:, 0]
    pw_w:  (Cout, Cin)      == pointwise.weight[:, :, 0, 0]
    bn*_params: (gamma, beta, running_mean, running_var)
    returns (N, Cout, H, W)
    """
    N, Cin, H, W = x.shape
    Cout = pw_w.shape[0]
    HW = H * W

    # TODO(synk): only stride=1 with 'same' padding (the module's defaults) is
    # implemented; stride>1 is not supported by this kernel.
    # TODO(synk): BatchNorm uses inference (running-stats) semantics; PyTorch
    # training-mode batch statistics are not reproduced.

    g1, be1, m1, v1 = bn1_params
    g2, be2, m2, v2 = bn2_params
    s1 = (g1 / jnp.sqrt(v1 + eps)).astype(jnp.float32)
    b1 = (be1 - m1 * s1).astype(jnp.float32)
    s2 = (g2 / jnp.sqrt(v2 + eps)).astype(jnp.float32)
    b2 = (be2 - m2 * s2).astype(jnp.float32)

    # Fold the BN scales into the conv weights (wrapper-side precompute).
    dw_f = jnp.transpose(dw_w.astype(jnp.float32) * s1[:, None, None],
                         (1, 2, 0))[..., None]                     # (KH, KW, Cin, 1)
    pw_f = pw_w.astype(jnp.float32) * s2[:, None]                  # (Cout, Cin)

    # Flat lane-dense activation layout: one zero row above/below, flatten
    # (H+2, W) onto the lane axis, plus one zero guard element at each end so
    # every 3x3 tap window is an in-bounds contiguous length-H*W lane slice.
    xh = jnp.pad(x, ((0, 0), (0, 0), (1, 1), (0, 0)))              # (N, Cin, H+2, W)
    xf = jnp.pad(xh.reshape(N, Cin, (H + 2) * W), ((0, 0), (0, 0), (1, 1)))
    L = xf.shape[-1]                                               # (H+2)*W + 2

    kernel = functools.partial(dsconv_kernel, H=H, W=W)
    out_flat = pl.pallas_call(
        kernel,
        out_shape=jax.ShapeDtypeStruct((N, Cout, HW), x.dtype),
        grid=(N,),
        in_specs=[
            pl.BlockSpec((None, Cin, L), lambda n: (n, 0, 0)),
            pl.BlockSpec((KH, KW, Cin, 1), lambda n: (0, 0, 0, 0)),
            pl.BlockSpec((Cin, 1), lambda n: (0, 0)),
            pl.BlockSpec((Cout, Cin), lambda n: (0, 0)),
            pl.BlockSpec((Cout, 1), lambda n: (0, 0)),
        ],
        out_specs=pl.BlockSpec((None, Cout, HW), lambda n: (n, 0, 0)),
        compiler_params=pltpu.CompilerParams(
            dimension_semantics=("parallel",),   # batch -> both TCs on v7x
            vmem_limit_bytes=32 * 1024 * 1024),
    )(xf, dw_f, b1.reshape(Cin, 1), pw_f, b2.reshape(Cout, 1))

    # Free (metadata-only) reshape back to the PyTorch NCHW output shape.
    return out_flat.reshape(N, Cout, H, W)


def _reference(x, dw_w, pw_w, bn1_params, bn2_params, eps=1e-5):
    """Pure-JAX reference (lax convs, inference-mode BN), NCHW."""
    Cin = x.shape[1]
    Cout = pw_w.shape[0]
    g1, be1, m1, v1 = bn1_params
    g2, be2, m2, v2 = bn2_params
    dn = ("NCHW", "HWIO", "NCHW")

    def bn(t, g, b, m, v):
        g, b, m, v = (p.reshape(1, -1, 1, 1) for p in (g, b, m, v))
        return (t - m) / jnp.sqrt(v + eps) * g + b

    dw_hwio = jnp.transpose(dw_w, (1, 2, 0)).reshape(KH, KW, 1, Cin)
    y = lax.conv_general_dilated(x.astype(jnp.float32), dw_hwio, (1, 1), "SAME",
                                 dimension_numbers=dn, feature_group_count=Cin)
    y = jnp.maximum(bn(y, g1, be1, m1, v1), 0.0)
    pw_hwio = jnp.transpose(pw_w, (1, 0)).reshape(1, 1, Cin, Cout)
    y = lax.conv_general_dilated(y, pw_hwio, (1, 1), "VALID", dimension_numbers=dn)
    y = jnp.maximum(bn(y, g2, be2, m2, v2), 0.0)
    return y


if __name__ == "__main__":
    # DSConv(inp=4, oup=8, stride=1, kernel_size=(3,3), padding='same')
    N, Cin, H, W = 2, 4, 16, 16
    Cout = 8

    key = jax.random.PRNGKey(0)
    k = jax.random.split(key, 8)

    # PyTorch-native NCHW input.
    x = jax.random.normal(k[0], (N, Cin, H, W), dtype=jnp.float32)

    # Deterministic synthetic parameters (PyTorch weight layouts, squeezed).
    dw_w = jax.random.normal(k[1], (Cin, KH, KW), dtype=jnp.float32) * 0.2   # depthwise.weight[:, 0]
    pw_w = jax.random.normal(k[2], (Cout, Cin), dtype=jnp.float32) * 0.2     # pointwise.weight[:, :, 0, 0]
    bn1 = (1.0 + 0.1 * jax.random.normal(k[3], (Cin,), dtype=jnp.float32),   # gamma
           0.1 * jax.random.normal(k[4], (Cin,), dtype=jnp.float32),         # beta
           0.05 * jax.random.normal(k[5], (Cin,), dtype=jnp.float32),        # running_mean
           jnp.abs(1.0 + 0.1 * jax.random.normal(k[6], (Cin,), dtype=jnp.float32)))  # running_var
    bn2 = (jnp.ones((Cout,), jnp.float32),
           jnp.zeros((Cout,), jnp.float32),
           jnp.zeros((Cout,), jnp.float32),
           jnp.ones((Cout,), jnp.float32))

    out = jax.block_until_ready(dsconv_forward(x, dw_w, pw_w, bn1, bn2))
    ref = jax.block_until_ready(_reference(x, dw_w, pw_w, bn1, bn2))

    assert out.shape == (N, Cout, H, W)
    assert jnp.max(jnp.abs(out - ref)) < 1e-4, "mismatch vs reference"

    print("KERNEL_OK")
</pallas_src>

<mosaic_0001>
module attributes {stable_mosaic.version = 11 : i64} {
  func.func @dsconv_kernel(%arg0: i32, %arg1: memref<1x4x290xf32, #tpu.memory_space<vmem>>, %arg2: memref<3x3x4x1xf32, #tpu.memory_space<vmem>>, %arg3: memref<4x1xf32, #tpu.memory_space<vmem>>, %arg4: memref<8x4xf32, #tpu.memory_space<vmem>>, %arg5: memref<8x1xf32, #tpu.memory_space<vmem>>, %arg6: memref<1x8x256xf32, #tpu.memory_space<vmem>>) attributes {dimension_semantics = [#tpu.dimension_semantics<parallel>], iteration_bounds = array<i64: 2>, scalar_prefetch = 0 : i64, scratch_operands = 0 : i64, tpu.core_type = #tpu.core_type<tc>, window_params = [{transform_indices = @transform_0, window_bounds = array<i64: 1, 4, 290>}, {pipeline_mode = #tpu.pipeline_mode<synchronous>, transform_indices = @transform_1, window_bounds = array<i64: 3, 3, 4, 1>}, {pipeline_mode = #tpu.pipeline_mode<synchronous>, transform_indices = @transform_2, window_bounds = array<i64: 4, 1>}, {pipeline_mode = #tpu.pipeline_mode<synchronous>, transform_indices = @transform_3, window_bounds = array<i64: 8, 4>}, {pipeline_mode = #tpu.pipeline_mode<synchronous>, transform_indices = @transform_4, window_bounds = array<i64: 8, 1>}, {transform_indices = @transform_5, window_bounds = array<i64: 1, 8, 256>}]} {
    %0 = tpu.iota {dimensions = array<i32: 1>} : vector<1x256xi32>
    %c16_i32 = arith.constant 16 : i32
    %c0_i32 = arith.constant 0 : i32
    %1 = arith.cmpi eq, %c16_i32, %c0_i32 : i32
    %c1_i32 = arith.constant 1 : i32
    %2 = arith.select %1, %c1_i32, %c16_i32 : i32
    %3 = vector.broadcast %2 : i32 to vector<1x256xi32>
    %4 = arith.remsi %0, %3 : vector<1x256xi32>
    %c0_i32_0 = arith.constant 0 : i32
    %5 = vector.broadcast %c0_i32_0 : i32 to vector<1x256xi32>
    %6 = arith.cmpi ne, %4, %5 : vector<1x256xi32>
    %c0_i32_1 = arith.constant 0 : i32
    %7 = vector.broadcast %c0_i32_1 : i32 to vector<1x256xi32>
    %8 = arith.cmpi slt, %4, %7 : vector<1x256xi32>
    %c0_i32_2 = arith.constant 0 : i32
    %9 = arith.cmpi slt, %2, %c0_i32_2 : i32
    %10 = vector.broadcast %9 : i1 to vector<1x256xi1>
    %11 = vector.broadcast %10 : vector<1x256xi1> to vector<1x256xi1>
    %12 = arith.xori %8, %11 : vector<1x256xi1>
    %13 = arith.andi %12, %6 : vector<1x256xi1>
    %14 = vector.broadcast %2 : i32 to vector<1x256xi32>
    %15 = arith.addi %4, %14 : vector<1x256xi32>
    %16 = arith.select %13, %15, %4 : vector<1x256xi1>, vector<1x256xi32>
    %c0_i32_3 = arith.constant 0 : i32
    %17 = vector.broadcast %c0_i32_3 : i32 to vector<1x256xi32>
    %18 = arith.cmpi sgt, %16, %17 : vector<1x256xi32>
    %c15_i32 = arith.constant 15 : i32
    %19 = vector.broadcast %c15_i32 : i32 to vector<1x256xi32>
    %20 = arith.cmpi slt, %16, %19 : vector<1x256xi32>
    %c0 = arith.constant 0 : index
    %c0_4 = arith.constant 0 : index
    %c0_5 = arith.constant 0 : index
    %21 = vector.load %arg1[%c0, %c0_4, %c0_5] : memref<1x4x290xf32, #tpu.memory_space<vmem>>, vector<1x4x256xf32>
    %22 = vector.shape_cast %21 : vector<1x4x256xf32> to vector<4x256xf32>
    %c0_6 = arith.constant 0 : index
    %c0_7 = arith.constant 0 : index
    %c0_8 = arith.constant 0 : index
    %c0_9 = arith.constant 0 : index
    %23 = vector.load %arg2[%c0_6, %c0_7, %c0_8, %c0_9] : memref<3x3x4x1xf32, #tpu.memory_space<vmem>>, vector<1x1x4x1xf32>
    %24 = vector.shape_cast %23 : vector<1x1x4x1xf32> to vector<4x1xf32>
    %25 = vector.broadcast %24 : vector<4x1xf32> to vector<4x256xf32>
    %26 = arith.mulf %22, %25 : vector<4x256xf32>
    %c0_10 = arith.constant 0 : index
    %c0_11 = arith.constant 0 : index
    %c16 = arith.constant 16 : index
    %27 = vector.load %arg1[%c0_10, %c0_11, %c16] : memref<1x4x290xf32, #tpu.memory_space<vmem>>, vector<1x4x256xf32>
    %28 = vector.shape_cast %27 : vector<1x4x256xf32> to vector<4x256xf32>
    %c1 = arith.constant 1 : index
    %c0_12 = arith.constant 0 : index
    %c0_13 = arith.constant 0 : index
    %c0_14 = arith.constant 0 : index
    %29 = vector.load %arg2[%c1, %c0_12, %c0_13, %c0_14] : memref<3x3x4x1xf32, #tpu.memory_space<vmem>>, vector<1x1x4x1xf32>
    %30 = vector.shape_cast %29 : vector<1x1x4x1xf32> to vector<4x1xf32>
    %31 = vector.broadcast %30 : vector<4x1xf32> to vector<4x256xf32>
    %32 = arith.mulf %28, %31 : vector<4x256xf32>
    %33 = arith.addf %26, %32 : vector<4x256xf32>
    %c0_15 = arith.constant 0 : index
    %c0_16 = arith.constant 0 : index
    %c32 = arith.constant 32 : index
    %34 = vector.load %arg1[%c0_15, %c0_16, %c32] : memref<1x4x290xf32, #tpu.memory_space<vmem>>, vector<1x4x256xf32>
    %35 = vector.shape_cast %34 : vector<1x4x256xf32> to vector<4x256xf32>
    %c2 = arith.constant 2 : index
    %c0_17 = arith.constant 0 : index
    %c0_18 = arith.constant 0 : index
    %c0_19 = arith.constant 0 : index
    %36 = vector.load %arg2[%c2, %c0_17, %c0_18, %c0_19] : memref<3x3x4x1xf32, #tpu.memory_space<vmem>>, vector<1x1x4x1xf32>
    %37 = vector.shape_cast %36 : vector<1x1x4x1xf32> to vector<4x1xf32>
    %38 = vector.broadcast %37 : vector<4x1xf32> to vector<4x256xf32>
    %39 = arith.mulf %35, %38 : vector<4x256xf32>
    %40 = arith.addf %33, %39 : vector<4x256xf32>
    %c0_20 = arith.constant 0 : index
    %c0_21 = arith.constant 0 : index
    %c1_22 = arith.constant 1 : index
    %41 = vector.load %arg1[%c0_20, %c0_21, %c1_22] : memref<1x4x290xf32, #tpu.memory_space<vmem>>, vector<1x4x256xf32>
    %42 = vector.shape_cast %41 : vector<1x4x256xf32> to vector<4x256xf32>
    %c0_23 = arith.constant 0 : index
    %c1_24 = arith.constant 1 : index
    %c0_25 = arith.constant 0 : index
    %c0_26 = arith.constant 0 : index
    %43 = vector.load %arg2[%c0_23, %c1_24, %c0_25, %c0_26] : memref<3x3x4x1xf32, #tpu.memory_space<vmem>>, vector<1x1x4x1xf32>
    %44 = vector.shape_cast %43 : vector<1x1x4x1xf32> to vector<4x1xf32>
    %45 = vector.broadcast %44 : vector<4x1xf32> to vector<4x256xf32>
    %46 = arith.mulf %42, %45 : vector<4x256xf32>
    %c0_27 = arith.constant 0 : index
    %c0_28 = arith.constant 0 : index
    %c17 = arith.constant 17 : index
    %47 = vector.load %arg1[%c0_27, %c0_28, %c17] : memref<1x4x290xf32, #tpu.memory_space<vmem>>, vector<1x4x256xf32>
    %48 = vector.shape_cast %47 : vector<1x4x256xf32> to vector<4x256xf32>
    %c1_29 = arith.constant 1 : index
    %c1_30 = arith.constant 1 : index
    %c0_31 = arith.constant 0 : index
    %c0_32 = arith.constant 0 : index
    %49 = vector.load %arg2[%c1_29, %c1_30, %c0_31, %c0_32] : memref<3x3x4x1xf32, #tpu.memory_space<vmem>>, vector<1x1x4x1xf32>
    %50 = vector.shape_cast %49 : vector<1x1x4x1xf32> to vector<4x1xf32>
    %51 = vector.broadcast %50 : vector<4x1xf32> to vector<4x256xf32>
    %52 = arith.mulf %48, %51 : vector<4x256xf32>
    %53 = arith.addf %46, %52 : vector<4x256xf32>
    %c0_33 = arith.constant 0 : index
    %c0_34 = arith.constant 0 : index
    %c33 = arith.constant 33 : index
    %54 = vector.load %arg1[%c0_33, %c0_34, %c33] : memref<1x4x290xf32, #tpu.memory_space<vmem>>, vector<1x4x256xf32>
    %55 = vector.shape_cast %54 : vector<1x4x256xf32> to vector<4x256xf32>
    %c2_35 = arith.constant 2 : index
    %c1_36 = arith.constant 1 : index
    %c0_37 = arith.constant 0 : index
    %c0_38 = arith.constant 0 : index
    %56 = vector.load %arg2[%c2_35, %c1_36, %c0_37, %c0_38] : memref<3x3x4x1xf32, #tpu.memory_space<vmem>>, vector<1x1x4x1xf32>
    %57 = vector.shape_cast %56 : vector<1x1x4x1xf32> to vector<4x1xf32>
    %58 = vector.broadcast %57 : vector<4x1xf32> to vector<4x256xf32>
    %59 = arith.mulf %55, %58 : vector<4x256xf32>
    %60 = arith.addf %53, %59 : vector<4x256xf32>
    %c0_39 = arith.constant 0 : index
    %c0_40 = arith.constant 0 : index
    %c2_41 = arith.constant 2 : index
    %61 = vector.load %arg1[%c0_39, %c0_40, %c2_41] : memref<1x4x290xf32, #tpu.memory_space<vmem>>, vector<1x4x256xf32>
    %62 = vector.shape_cast %61 : vector<1x4x256xf32> to vector<4x256xf32>
    %c0_42 = arith.constant 0 : index
    %c2_43 = arith.constant 2 : index
    %c0_44 = arith.constant 0 : index
    %c0_45 = arith.constant 0 : index
    %63 = vector.load %arg2[%c0_42, %c2_43, %c0_44, %c0_45] : memref<3x3x4x1xf32, #tpu.memory_space<vmem>>, vector<1x1x4x1xf32>
    %64 = vector.shape_cast %63 : vector<1x1x4x1xf32> to vector<4x1xf32>
    %65 = vector.broadcast %64 : vector<4x1xf32> to vector<4x256xf32>
    %66 = arith.mulf %62, %65 : vector<4x256xf32>
    %c0_46 = arith.constant 0 : index
    %c0_47 = arith.constant 0 : index
    %c18 = arith.constant 18 : index
    %67 = vector.load %arg1[%c0_46, %c0_47, %c18] : memref<1x4x290xf32, #tpu.memory_space<vmem>>, vector<1x4x256xf32>
    %68 = vector.shape_cast %67 : vector<1x4x256xf32> to vector<4x256xf32>
    %c1_48 = arith.constant 1 : index
    %c2_49 = arith.constant 2 : index
    %c0_50 = arith.constant 0 : index
    %c0_51 = arith.constant 0 : index
    %69 = vector.load %arg2[%c1_48, %c2_49, %c0_50, %c0_51] : memref<3x3x4x1xf32, #tpu.memory_space<vmem>>, vector<1x1x4x1xf32>
    %70 = vector.shape_cast %69 : vector<1x1x4x1xf32> to vector<4x1xf32>
    %71 = vector.broadcast %70 : vector<4x1xf32> to vector<4x256xf32>
    %72 = arith.mulf %68, %71 : vector<4x256xf32>
    %73 = arith.addf %66, %72 : vector<4x256xf32>
    %c0_52 = arith.constant 0 : index
    %c0_53 = arith.constant 0 : index
    %c34 = arith.constant 34 : index
    %74 = vector.load %arg1[%c0_52, %c0_53, %c34] : memref<1x4x290xf32, #tpu.memory_space<vmem>>, vector<1x4x256xf32>
    %75 = vector.shape_cast %74 : vector<1x4x256xf32> to vector<4x256xf32>
    %c2_54 = arith.constant 2 : index
    %c2_55 = arith.constant 2 : index
    %c0_56 = arith.constant 0 : index
    %c0_57 = arith.constant 0 : index
    %76 = vector.load %arg2[%c2_54, %c2_55, %c0_56, %c0_57] : memref<3x3x4x1xf32, #tpu.memory_space<vmem>>, vector<1x1x4x1xf32>
    %77 = vector.shape_cast %76 : vector<1x1x4x1xf32> to vector<4x1xf32>
    %78 = vector.broadcast %77 : vector<4x1xf32> to vector<4x256xf32>
    %79 = arith.mulf %75, %78 : vector<4x256xf32>
    %80 = arith.addf %73, %79 : vector<4x256xf32>
    %cst = arith.constant 0.000000e+00 : f32
    %81 = vector.shape_cast %18 : vector<1x256xi1> to vector<1x256xi1>
    %82 = vector.broadcast %81 : vector<1x256xi1> to vector<4x256xi1>
    %83 = vector.broadcast %cst : f32 to vector<4x256xf32>
    %84 = arith.select %82, %40, %83 : vector<4x256xi1>, vector<4x256xf32>
    %85 = arith.addf %84, %60 : vector<4x256xf32>
    %cst_58 = arith.constant 0.000000e+00 : f32
    %86 = vector.shape_cast %20 : vector<1x256xi1> to vector<1x256xi1>
    %87 = vector.broadcast %86 : vector<1x256xi1> to vector<4x256xi1>
    %88 = vector.broadcast %cst_58 : f32 to vector<4x256xf32>
    %89 = arith.select %87, %80, %88 : vector<4x256xi1>, vector<4x256xf32>
    %90 = arith.addf %85, %89 : vector<4x256xf32>
    %c0_59 = arith.constant 0 : index
    %c0_60 = arith.constant 0 : index
    %91 = vector.load %arg3[%c0_59, %c0_60] : memref<4x1xf32, #tpu.memory_space<vmem>>, vector<4x1xf32>
    %92 = vector.broadcast %91 : vector<4x1xf32> to vector<4x256xf32>
    %93 = arith.addf %90, %92 : vector<4x256xf32>
    %cst_61 = arith.constant 0.000000e+00 : f32
    %94 = vector.broadcast %cst_61 : f32 to vector<4x256xf32>
    %95 = arith.maximumf %93, %94 : vector<4x256xf32>
    %c0_62 = arith.constant 0 : index
    %c0_63 = arith.constant 0 : index
    %96 = vector.load %arg4[%c0_62, %c0_63] : memref<8x4xf32, #tpu.memory_space<vmem>>, vector<8x4xf32>
    %97 = vector.extract_strided_slice %96 {offsets = [0, 0], sizes = [8, 1], strides = [1, 1]} : vector<8x4xf32> to vector<8x1xf32>
    %98 = vector.extract_strided_slice %95 {offsets = [0, 0], sizes = [1, 256], strides = [1, 1]} : vector<4x256xf32> to vector<1x256xf32>
    %99 = vector.broadcast %97 : vector<8x1xf32> to vector<8x256xf32>
    %100 = vector.broadcast %98 : vector<1x256xf32> to vector<8x256xf32>
    %101 = arith.mulf %99, %100 : vector<8x256xf32>
    %102 = vector.extract_strided_slice %96 {offsets = [0, 1], sizes = [8, 1], strides = [1, 1]} : vector<8x4xf32> to vector<8x1xf32>
    %103 = vector.extract_strided_slice %95 {offsets = [1, 0], sizes = [1, 256], strides = [1, 1]} : vector<4x256xf32> to vector<1x256xf32>
    %104 = vector.broadcast %102 : vector<8x1xf32> to vector<8x256xf32>
    %105 = vector.broadcast %103 : vector<1x256xf32> to vector<8x256xf32>
    %106 = arith.mulf %104, %105 : vector<8x256xf32>
    %107 = arith.addf %101, %106 : vector<8x256xf32>
    %108 = vector.extract_strided_slice %96 {offsets = [0, 2], sizes = [8, 1], strides = [1, 1]} : vector<8x4xf32> to vector<8x1xf32>
    %109 = vector.extract_strided_slice %95 {offsets = [2, 0], sizes = [1, 256], strides = [1, 1]} : vector<4x256xf32> to vector<1x256xf32>
    %110 = vector.broadcast %108 : vector<8x1xf32> to vector<8x256xf32>
    %111 = vector.broadcast %109 : vector<1x256xf32> to vector<8x256xf32>
    %112 = arith.mulf %110, %111 : vector<8x256xf32>
    %113 = arith.addf %107, %112 : vector<8x256xf32>
    %114 = vector.extract_strided_slice %96 {offsets = [0, 3], sizes = [8, 1], strides = [1, 1]} : vector<8x4xf32> to vector<8x1xf32>
    %115 = vector.extract_strided_slice %95 {offsets = [3, 0], sizes = [1, 256], strides = [1, 1]} : vector<4x256xf32> to vector<1x256xf32>
    %116 = vector.broadcast %114 : vector<8x1xf32> to vector<8x256xf32>
    %117 = vector.broadcast %115 : vector<1x256xf32> to vector<8x256xf32>
    %118 = arith.mulf %116, %117 : vector<8x256xf32>
    %119 = arith.addf %113, %118 : vector<8x256xf32>
    %c0_64 = arith.constant 0 : index
    %c0_65 = arith.constant 0 : index
    %120 = vector.load %arg5[%c0_64, %c0_65] : memref<8x1xf32, #tpu.memory_space<vmem>>, vector<8x1xf32>
    %121 = vector.broadcast %120 : vector<8x1xf32> to vector<8x256xf32>
    %122 = arith.addf %119, %121 : vector<8x256xf32>
    %cst_66 = arith.constant 0.000000e+00 : f32
    %123 = vector.broadcast %cst_66 : f32 to vector<8x256xf32>
    %124 = arith.maximumf %122, %123 : vector<8x256xf32>
    %c0_67 = arith.constant 0 : index
    %c0_68 = arith.constant 0 : index
    %c0_69 = arith.constant 0 : index
    %125 = vector.load %arg6[%c0_67, %c0_68, %c0_69] : memref<1x8x256xf32, #tpu.memory_space<vmem>>, vector<1x8x256xf32>
    %126 = vector.shape_cast %125 : vector<1x8x256xf32> to vector<8x256xf32>
    %127 = vector.shape_cast %124 : vector<8x256xf32> to vector<1x8x256xf32>
    tpu.vector_store %arg6[%c0_67, %c0_68, %c0_69], %127 {strides = array<i32>} : memref<1x8x256xf32, #tpu.memory_space<vmem>>, vector<1x8x256xf32>,
    return
  }
  func.func @transform_0(%arg0: i32) -> (i32, i32, i32) {
    %c0_i32 = arith.constant 0 : i32
    %c0_i32_0 = arith.constant 0 : i32
    %c0_i32_1 = arith.constant 0 : i32
    return %arg0, %c0_i32, %c0_i32_0 : i32, i32, i32
  }
  func.func @transform_1(%arg0: i32) -> (i32, i32, i32, i32) {
    %c0_i32 = arith.constant 0 : i32
    %c0_i32_0 = arith.constant 0 : i32
    %c0_i32_1 = arith.constant 0 : i32
    %c0_i32_2 = arith.constant 0 : i32
    %c0_i32_3 = arith.constant 0 : i32
    return %c0_i32, %c0_i32_0, %c0_i32_1, %c0_i32_2 : i32, i32, i32, i32
  }
  func.func @transform_2(%arg0: i32) -> (i32, i32) {
    %c0_i32 = arith.constant 0 : i32
    %c0_i32_0 = arith.constant 0 : i32
    %c0_i32_1 = arith.constant 0 : i32
    return %c0_i32, %c0_i32_0 : i32, i32
  }
  func.func @transform_3(%arg0: i32) -> (i32, i32) {
    %c0_i32 = arith.constant 0 : i32
    %c0_i32_0 = arith.constant 0 : i32
    %c0_i32_1 = arith.constant 0 : i32
    return %c0_i32, %c0_i32_0 : i32, i32
  }
  func.func @transform_4(%arg0: i32) -> (i32, i32) {
    %c0_i32 = arith.constant 0 : i32
    %c0_i32_0 = arith.constant 0 : i32
    %c0_i32_1 = arith.constant 0 : i32
    return %c0_i32, %c0_i32_0 : i32, i32
  }
  func.func @transform_5(%arg0: i32) -> (i32, i32, i32) {
    %c0_i32 = arith.constant 0 : i32
    %c0_i32_0 = arith.constant 0 : i32
    %c0_i32_1 = arith.constant 0 : i32
    return %arg0, %c0_i32, %c0_i32_0 : i32, i32, i32
  }
}

</mosaic_0001>

<llo_original>
// kernel: tpu_custom_call.1
$region0: #{tpu_custom_call.1}
  #allocation0 [shape = 'u32[]', space=smem, size = 0x4, offset = 0x4, fixed_abs, tag = 'smem constant byte address 0x4 - core index']
  #allocation1 [shape = 'u32[144,128]{1,0:T(1,128)}', space=vmem, size = 0x12000, scoped, tag = 'internal scratch']
  %s0 = inlined_call_operand.vmem [shape: f32[2,4,290], index: 0, kind: input, shape index: {}]
  %s1 = inlined_call_operand.vmem [shape: f32[3,3,4,1], index: 1, kind: input, shape index: {}]
  %s2 = inlined_call_operand.vmem [shape: f32[4,1], index: 2, kind: input, shape index: {}]
  %s3 = inlined_call_operand.vmem [shape: f32[8,4], index: 3, kind: input, shape index: {}]
  %s4 = inlined_call_operand.vmem [shape: f32[8,1], index: 4, kind: input, shape index: {}]
  %s5 = inlined_call_operand.hbm [shape: f32[2,8,256], index: 5, kind: output, shape index: {}]
  %s6 = sld [smem:[#allocation0]]
  $region53: #{tpu_custom_call.1} parent=0
    _
  %s8 = ssub.s32 1, %s6
  %s9 = scalar_select 0, %s8, %s6
  $region1: #{tpu_custom_call.1} parent=0
    #allocation2 [shape = 'u8[16384]{0}', space=vmem, size = 0x4000, scoped, tag = 'output window, operand 0']
    #allocation3 [shape = 's32[2]{0}', space=sflag, size = 0x8, scoped, tag = 'scoped memory for tpu_custom_call.1']
    %10 = vsyncpa [#allocation3], 0
    %s11 = scalar_lea.sflag [#allocation3], 1
    %12 = vsyncpa %s11, 0
    loop: start=0, step=1, limit=4
    $region2: #{tpu_custom_call.1} parent=1 // loop_pre_header
      _
    $region3: #{tpu_custom_call.1} parent=1 // loop_header
      %s14 = sphi 0, %s18
      %p15 = scmp.ge.s32.totalorder %s14, 4
      %s24 = sphi 0, %s26
      %s27 = sphi 0, %s24
      %s28 = sphi 0, %s27
      %s44 = sphi 0, %s28
      %s48 = sphi 0, %s48
      %s50 = sphi 0, %s48
      %s51 = sphi 0, %s50
      %s65 = sphi 0, %s51
      %s69 = sphi 0, %s69
      %s71 = sphi 0, %s69
      %s72 = sphi 0, %s71
      %s86 = sphi 0, %s72
      %s90 = sphi 0, %s90
      %s92 = sphi 0, %s90
      %s93 = sphi 0, %s92
      %s107 = sphi 0, %s93
      %s111 = sphi 0, %s111
      %s113 = sphi 0, %s111
      %s114 = sphi 0, %s113
      %s128 = sphi 0, %s114
      %s134 = sphi 0, %s136
      %s137 = sphi 0, %s134
      %s138 = sphi 0, %s137
      %s154 = sphi 0, %s138
    $region4: #{tpu_custom_call.1} parent=1 // loop_header_branch
      %17 = sbr.rel (%p15) target = $region8
    $region5: #{tpu_custom_call.1} parent=1 // loop_body
      %s19 = ssub.s32 %s14, 1
      %s20 = ssub.s32 %s14, 2
      %s21 = sadd.s32 %s14, 1
      %s22 = ssub.s32 %s14, %s21
      %p23 = scmp.eq.s32.totalorder %s22, 0
      %s25 = sadd.s32 %s24, 1
      %s26 = scalar_select %p23, %s24, %s25
      %p29 = pneg %p23
      %p30 = scmp.eq.s32.totalorder %s14, 1
      %p31 = por %p29, %p30
      %p32 = scmp.ne.s32.totalorder %s24, %s27
      %p33 = scmp.eq.s32.totalorder %s14, 0
      %p34 = por %p32, %p33
      %p35 = scmp.ne.s32.totalorder %s24, %s27
      %p36 = scmp.eq.s32.totalorder %s19, 1
      %p37 = por %p35, %p36
      %p38 = scmp.ne.s32.totalorder %s27, %s28
      %p39 = scmp.eq.s32.totalorder %s19, 0
      %p40 = por %p38, %p39
      %p41 = scmp.ne.s32.totalorder %s27, %s28
      %p42 = scmp.eq.s32.totalorder %s20, 1
      %p43 = por %p41, %p42
      %p45 = scmp.ne.s32.totalorder %s28, %s44
      %p46 = scmp.eq.s32.totalorder %s20, 0
      %p47 = por %p45, %p46
      %s49 = sadd.s32 %s48, 1
      %p52 = scmp.eq.s32.totalorder %s14, 1
      %p53 = scmp.ne.s32.totalorder %s48, %s50
      %p54 = scmp.eq.s32.totalorder %s14, 0
      %p55 = por %p53, %p54
      %p56 = scmp.ne.s32.totalorder %s48, %s50
      %p57 = scmp.eq.s32.totalorder %s19, 1
      %p58 = por %p56, %p57
      %p59 = scmp.ne.s32.totalorder %s50, %s51
      %p60 = scmp.eq.s32.totalorder %s19, 0
      %p61 = por %p59, %p60
      %p62 = scmp.ne.s32.totalorder %s50, %s51
      %p63 = scmp.eq.s32.totalorder %s20, 1
      %p64 = por %p62, %p63
      %p66 = scmp.ne.s32.totalorder %s51, %s65
      %p67 = scmp.eq.s32.totalorder %s20, 0
      %p68 = por %p66, %p67
      %s70 = sadd.s32 %s69, 1
      %p73 = scmp.eq.s32.totalorder %s14, 1
      %p74 = scmp.ne.s32.totalorder %s69, %s71
      %p75 = scmp.eq.s32.totalorder %s14, 0
      %p76 = por %p74, %p75
      %p77 = scmp.ne.s32.totalorder %s69, %s71
      %p78 = scmp.eq.s32.totalorder %s19, 1
      %p79 = por %p77, %p78
      %p80 = scmp.ne.s32.totalorder %s71, %s72
      %p81 = scmp.eq.s32.totalorder %s19, 0
      %p82 = por %p80, %p81
      %p83 = scmp.ne.s32.totalorder %s71, %s72
      %p84 = scmp.eq.s32.totalorder %s20, 1
      %p85 = por %p83, %p84
      %p87 = scmp.ne.s32.totalorder %s72, %s86
      %p88 = scmp.eq.s32.totalorder %s20, 0
      %p89 = por %p87, %p88
      %s91 = sadd.s32 %s90, 1
      %p94 = scmp.eq.s32.totalorder %s14, 1
      %p95 = scmp.ne.s32.totalorder %s90, %s92
      %p96 = scmp.eq.s32.totalorder %s14, 0
      %p97 = por %p95, %p96
      %p98 = scmp.ne.s32.totalorder %s90, %s92
      %p99 = scmp.eq.s32.totalorder %s19, 1
      %p100 = por %p98, %p99
      %p101 = scmp.ne.s32.totalorder %s92, %s93
      %p102 = scmp.eq.s32.totalorder %s19, 0
      %p103 = por %p101, %p102
      %p104 = scmp.ne.s32.totalorder %s92, %s93
      %p105 = scmp.eq.s32.totalorder %s20, 1
      %p106 = por %p104, %p105
      %p108 = scmp.ne.s32.totalorder %s93, %s107
      %p109 = scmp.eq.s32.totalorder %s20, 0
      %p110 = por %p108, %p109
      %s112 = sadd.s32 %s111, 1
      %p115 = scmp.eq.s32.totalorder %s14, 1
      %p116 = scmp.ne.s32.totalorder %s111, %s113
      %p117 = scmp.eq.s32.totalorder %s14, 0
      %p118 = por %p116, %p117
      %p119 = scmp.ne.s32.totalorder %s111, %s113
      %p120 = scmp.eq.s32.totalorder %s19, 1
      %p121 = por %p119, %p120
      %p122 = scmp.ne.s32.totalorder %s113, %s114
      %p123 = scmp.eq.s32.totalorder %s19, 0
      %p124 = por %p122, %p123
      %p125 = scmp.ne.s32.totalorder %s113, %s114
      %p126 = scmp.eq.s32.totalorder %s20, 1
      %p127 = por %p125, %p126
      %p129 = scmp.ne.s32.totalorder %s114, %s128
      %p130 = scmp.eq.s32.totalorder %s20, 0
      %p131 = por %p129, %p130
      %s132 = ssub.s32 %s14, %s21
      %p133 = scmp.eq.s32.totalorder %s132, 0
      %s135 = sadd.s32 %s134, 1
      %s136 = scalar_select %p133, %s134, %s135
      %p139 = pneg %p133
      %p140 = scmp.eq.s32.totalorder %s14, 1
      %p141 = por %p139, %p140
      %p142 = scmp.ne.s32.totalorder %s134, %s137
      %p143 = scmp.eq.s32.totalorder %s14, 0
      %p144 = por %p142, %p143
      %p145 = scmp.ne.s32.totalorder %s134, %s137
      %p146 = scmp.eq.s32.totalorder %s19, 1
      %p147 = por %p145, %p146
      %p148 = scmp.ne.s32.totalorder %s137, %s138
      %p149 = scmp.eq.s32.totalorder %s19, 0
      %p150 = por %p148, %p149
      %p151 = scmp.ne.s32.totalorder %s137, %s138
      %p152 = scmp.eq.s32.totalorder %s20, 1
      %p153 = por %p151, %p152
      %p155 = scmp.ne.s32.totalorder %s138, %s154
      %p156 = scmp.eq.s32.totalorder %s20, 0
      %p157 = por %p155, %p156
      %p158 = scmp.le.s32.totalorder 1, %s14
      %p159 = scmp.lt.s32.totalorder %s14, 3
      %p160 = pnand %p158, %p159
      %p161 = pneg %p160
      // Predicated region
      $region9: #{tpu_custom_call.1} parent=5 // pred_check
        _
      $region10: #{tpu_custom_call.1} parent=5 // pred_check_branch
        %163 = sbr.rel (%p160) target = $region12
      $region11: #{tpu_custom_call.1} parent=5 // pred_region
        %s164 = ssub.s32 %s14, 1
        // Predicated region
        $region13: #{tpu_custom_call.1} parent=11 // pred_check
          %p165 = pneg %p61
        $region14: #{tpu_custom_call.1} parent=11 // pred_check_branch
          %167 = sbr.rel (%p165) target = $region16
        $region15: #{tpu_custom_call.1} parent=11 // pred_region
          _
        $region16: #{tpu_custom_call.1} parent=11 // pred_fallthru
          _
        // Predicated region
        $region17: #{tpu_custom_call.1} parent=11 // pred_check
          %p168 = pneg %p82
        $region18: #{tpu_custom_call.1} parent=11 // pred_check_branch
          %170 = sbr.rel (%p168) target = $region20
        $region19: #{tpu_custom_call.1} parent=11 // pred_region
          _
        $region20: #{tpu_custom_call.1} parent=11 // pred_fallthru
          _
        // Predicated region
        $region21: #{tpu_custom_call.1} parent=11 // pred_check
          %p171 = pneg %p103
        $region22: #{tpu_custom_call.1} parent=11 // pred_check_branch
          %173 = sbr.rel (%p171) target = $region24
        $region23: #{tpu_custom_call.1} parent=11 // pred_region
          _
        $region24: #{tpu_custom_call.1} parent=11 // pred_fallthru
          _
        // Predicated region
        $region25: #{tpu_custom_call.1} parent=11 // pred_check
          %p174 = pneg %p124
        $region26: #{tpu_custom_call.1} parent=11 // pred_check_branch
          %176 = sbr.rel (%p174) target = $region28
        $region27: #{tpu_custom_call.1} parent=11 // pred_region
          _
        $region28: #{tpu_custom_call.1} parent=11 // pred_fallthru
          _
      $region12: #{tpu_custom_call.1} parent=5 // pred_fallthru
        _
      %p177 = scmp.lt.s32.totalorder %s14, 2
      // Predicated region
      $region29: #{tpu_custom_call.1} parent=5 // pred_check
        %p178 = pneg %p177
      $region30: #{tpu_custom_call.1} parent=5 // pred_check_branch
        %180 = sbr.rel (%p178) target = $region32
      $region31: #{tpu_custom_call.1} parent=5 // pred_region
        // Predicated region
        $region33: #{tpu_custom_call.1} parent=31 // pred_check
          %p181 = pneg %p34
        $region34: #{tpu_custom_call.1} parent=31 // pred_check_branch
          %183 = sbr.rel (%p181) target = $region36
        $region35: #{tpu_custom_call.1} parent=31 // pred_region
          %p184 = scmp.lt.s32.totalorder %s14, 1
          %s185 = scalar_select %p184, %s14, 1
          %s186 = smul.addr %s185, 3
          %s187 = smul.addr %s186, 4
          %s188 = scalar_lea.vmem %s0, %s187
        $region36: #{tpu_custom_call.1} parent=31 // pred_fallthru
          _
      $region32: #{tpu_custom_call.1} parent=5 // pred_fallthru
        _
      %p189 = scmp.le.s32.totalorder 1, %s14
      %p190 = scmp.lt.s32.totalorder %s14, 3
      %p191 = pnand %p189, %p190
      %p192 = pneg %p191
      // Predicated region
      $region37: #{tpu_custom_call.1} parent=5 // pred_check
        _
      $region38: #{tpu_custom_call.1} parent=5 // pred_check_branch
        %194 = sbr.rel (%p191) target = $region40
      $region39: #{tpu_custom_call.1} parent=5 // pred_region
        %s195 = ssub.s32 %s14, 1
        %p196 = scmp.lt.s32.totalorder %s19, 1
        %s197 = scalar_select %p196, %s19, 1
        %s198 = smul.addr %s197, 3
        %s199 = smul.addr %s198, 4
        %s200 = scalar_lea.vmem %s0, %s199
        %p201 = pneg %p40
        %p202 = pneg %p37
        %p203 = pneg %p61
        %p204 = pneg %p58
        %p205 = pneg %p82
        %p206 = pneg %p79
        %p207 = pneg %p103
        %p208 = pneg %p100
        %p209 = pneg %p124
        %p210 = pneg %p121
        %p211 = pneg %p150
        %p212 = pneg %p147
        %s213 = sand.u32 %s137, 1
        %s214 = scalar_lea.sflag [#allocation3], %s213
        %s215 = sand.u32 %s137, 1
        %s216 = smul.addr %s215, 16
        %s217 = scalar_lea.vmem [#allocation2], %s216
        %p218 = scmp.lt.s32.totalorder %s19, 1
        %s219 = scalar_select %p218, %s19, 1
        %s220 = smul.addr %s219, 3
        %s221 = smul.addr %s220, 4
        %s222 = scalar_lea.vmem %s0, %s221
        %v223 = vlaneseq
        %v224 = vand.u32 %v223, 127
        %v225 = vadd.s32 %v224, 128
        %vm226 = vcmp.lt.s32.totalorder %v224, 0
        %v227 = vsub.s32 0, %v224
        %v228 = vsel %vm226, %v227, %v224
        %v229 = vshrl.u32 %v228, 4
        %v230 = vand.u32 %v228, 15
        %v231 = vsub.s32 0, %v230
        %v232 = vsel %vm226, %v231, %v230
        %vm233 = vcmp.lt.s32.totalorder %v225, 0
        %v234 = vsub.s32 0, %v225
        %v235 = vsel %vm233, %v234, %v225
        %v236 = vshrl.u32 %v235, 4
        %v237 = vand.u32 %v235, 15
        %v238 = vsub.s32 0, %v237
        %v239 = vsel %vm233, %v238, %v237
        %vm240 = vcmp.ne.s32.totalorder %v232, 0
        %vm241 = vcmp.ne.s32.totalorder %v239, 0
        %vm242 = vcmp.lt.s32.totalorder %v232, 0
        %vm243 = vcmp.lt.s32.totalorder %v239, 0
        %vm244 = vmand %vm242, %vm240
        %vm245 = vmand %vm243, %vm241
        %v246 = vadd.s32 %v232, 16
        %v247 = vadd.s32 %v239, 16
        %v248 = vsel %vm244, %v246, %v232
        %v249 = vsel %vm245, %v247, %v239
        %vm250 = vcmp.gt.s32.totalorder %v248, 0
        %vm251 = vcmp.gt.s32.totalorder %v249, 0
        %vm252 = vcmp.lt.s32.totalorder %v248, 15
        %vm253 = vcmp.lt.s32.totalorder %v249, 15
        %v254 = vld [vmem:[%s222] sm:$0xff]
        %v255 = vld [vmem:[%s1] sm:$0xf]
        %257 = vset.pattern.permute.xlu0 0
        %258 = vperm.xlu0 %257, %v255
        %v259 = vpop.permute.xlu0 %258
        %v261 = vunpack.c.l.s4 839922192
        %v262 = vunpack.c.0.s8 %v261
        %v263 = vlaneseq
        %v264 = vshrl.u32 %v263, 7
        %v265 = vsub.s32 %v262, %v264
        %v266 = vrot.slane %v259, %v265
        %v268 = vmul.f32 %v254, %v266
        %v269 = vld [vmem:[%s222] sm:$0xff]
        %v270 = vld [vmem:[%s222 + $0x8] sm:$0xf]
        %s271 = scalar_lea.vmem %s1, 12
        %v272 = vld [vmem:[%s271] sm:$0xf]
        %274 = vset.pattern.permute.xlu0 0
        %275 = vperm.xlu0 %274, %v272
        %v276 = vpop.permute.xlu0 %275
        %v278 = vunpack.c.l.s4 839922192
        %v279 = vunpack.c.0.s8 %v278
        %v280 = vlaneseq
        %v281 = vshrl.u32 %v280, 7
        %v282 = vsub.s32 %v279, %v281
        %v283 = vrot.slane %v276, %v282
        %v285 = vmul.f32 %v269, %v283
        %v286 = vmul.f32 %v270, %v283
        %289 = vrot.lane.b32.xlu0 %v285, 112
        %v290 = vpop.permute.xlu0 %289
        %291 = vrot.lane.b32.xlu0 %v286, 112
        %v292 = vpop.permute.xlu0 %291
        %v293 = vrot.slane %v290, 4
        %v294 = vrot.slane %v292, 4
        %vm295 = vcmask 1043456
        %v296 = vsel %vm295, %v293, %v294
        %vm297 = vcmask 916480
        %v298 = vsel %vm297, %v290, %v296
        %v300 = vadd.f32 %v268, %v298
        %s301 = scalar_lea.vmem %s1, 24
        %v302 = vld [vmem:[%s301] sm:$0xf]
        %304 = vset.pattern.permute.xlu0 0
        %305 = vperm.xlu0 %304, %v302
        %v306 = vpop.permute.xlu0 %305
        %v308 = vunpack.c.l.s4 839922192
        %v309 = vunpack.c.0.s8 %v308
        %v310 = vlaneseq
        %v311 = vshrl.u32 %v310, 7
        %v312 = vsub.s32 %v309, %v311
        %v313 = vrot.slane %v306, %v312
        %v315 = vmul.f32 %v269, %v313
        %v316 = vmul.f32 %v270, %v313
        %319 = vrot.lane.b32.xlu0 %v315, 96
        %v320 = vpop.permute.xlu0 %319
        %321 = vrot.lane.b32.xlu0 %v316, 96
        %v322 = vpop.permute.xlu0 %321
        %v323 = vrot.slane %v320, 4
        %v324 = vrot.slane %v322, 4
        %v325 = vsel %vm295, %v323, %v324
        %vm326 = vcmask 785408
        %v327 = vsel %vm326, %v320, %v325
        %v329 = vadd.f32 %v300, %v327
        %s330 = scalar_lea.vmem %s1, 4
        %v331 = vld [vmem:[%s330] sm:$0xf]
        %333 = vset.pattern.permute.xlu0 0
        %334 = vperm.xlu0 %333, %v331
        %v335 = vpop.permute.xlu0 %334
        %v337 = vunpack.c.l.s4 839922192
        %v338 = vunpack.c.0.s8 %v337
        %v339 = vlaneseq
        %v340 = vshrl.u32 %v339, 7
        %v341 = vsub.s32 %v338, %v340
        %v342 = vrot.slane %v335, %v341
        %v344 = vmul.f32 %v269, %v342
        %v345 = vmul.f32 %v270, %v342
        %s346 = scalar_lea.vmem %s1, 16
        %v347 = vld [vmem:[%s346] sm:$0xf]
        %349 = vset.pattern.permute.xlu0 0
        %350 = vperm.xlu0 %349, %v347
        %v351 = vpop.permute.xlu0 %350
        %v353 = vunpack.c.l.s4 839922192
        %v354 = vunpack.c.0.s8 %v353
        %v355 = vlaneseq
        %v356 = vshrl.u32 %v355, 7
        %v357 = vsub.s32 %v354, %v356
        %v358 = vrot.slane %v351, %v357
        %v360 = vmul.f32 %v269, %v358
        %v361 = vmul.f32 %v270, %v358
        %364 = vrot.lane.b32.xlu0 %v360, 112
        %v365 = vpop.permute.xlu0 %364
        %366 = vrot.lane.b32.xlu0 %v361, 112
        %v367 = vpop.permute.xlu0 %366
        %v368 = vrot.slane %v365, 4
        %v369 = vrot.slane %v367, 4
        %v370 = vsel %vm295, %v368, %v369
        %v371 = vsel %vm297, %v365, %v370
        %v374 = vadd.f32 %v344, %v371
        %v375 = vadd.f32 %v345, %v367
        %s376 = scalar_lea.vmem %s1, 28
        %v377 = vld [vmem:[%s376] sm:$0xf]
        %379 = vset.pattern.permute.xlu0 0
        %380 = vperm.xlu0 %379, %v377
        %v381 = vpop.permute.xlu0 %380
        %v383 = vunpack.c.l.s4 839922192
        %v384 = vunpack.c.0.s8 %v383
        %v385 = vlaneseq
        %v386 = vshrl.u32 %v385, 7
        %v387 = vsub.s32 %v384, %v386
        %v388 = vrot.slane %v381, %v387
        %v390 = vmul.f32 %v269, %v388
        %v391 = vmul.f32 %v270, %v388
        %394 = vrot.lane.b32.xlu0 %v390, 96
        %v395 = vpop.permute.xlu0 %394
        %396 = vrot.lane.b32.xlu0 %v391, 96
        %v397 = vpop.permute.xlu0 %396
        %v398 = vrot.slane %v395, 4
        %v399 = vrot.slane %v397, 4
        %v400 = vsel %vm295, %v398, %v399
        %v401 = vsel %vm326, %v395, %v400
        %v404 = vadd.f32 %v374, %v401
        %v405 = vadd.f32 %v375, %v397
        %s406 = scalar_lea.vmem %s1, 8
        %v407 = vld [vmem:[%s406] sm:$0xf]
        %409 = vset.pattern.permute.xlu0 0
        %410 = vperm.xlu0 %409, %v407
        %v411 = vpop.permute.xlu0 %410
        %v413 = vunpack.c.l.s4 839922192
        %v414 = vunpack.c.0.s8 %v413
        %v415 = vlaneseq
        %v416 = vshrl.u32 %v415, 7
        %v417 = vsub.s32 %v414, %v416
        %v418 = vrot.slane %v411, %v417
        %v420 = vmul.f32 %v269, %v418
        %v421 = vmul.f32 %v270, %v418
        %s422 = scalar_lea.vmem %s1, 20
        %v423 = vld [vmem:[%s422] sm:$0xf]
        %425 = vset.pattern.permute.xlu0 0
        %426 = vperm.xlu0 %425, %v423
        %v427 = vpop.permute.xlu0 %426
        %v429 = vunpack.c.l.s4 839922192
        %v430 = vunpack.c.0.s8 %v429
        %v431 = vlaneseq
        %v432 = vshrl.u32 %v431, 7
        %v433 = vsub.s32 %v430, %v432
        %v434 = vrot.slane %v427, %v433
        %v436 = vmul.f32 %v269, %v434
        %v437 = vmul.f32 %v270, %v434
        %440 = vrot.lane.b32.xlu0 %v436, 112
        %v441 = vpop.permute.xlu0 %440
        %442 = vrot.lane.b32.xlu0 %v437, 112
        %v443 = vpop.permute.xlu0 %442
        %v444 = vrot.slane %v441, 4
        %v445 = vrot.slane %v443, 4
        %v446 = vsel %vm295, %v444, %v445
        %v447 = vsel %vm297, %v441, %v446
        %v450 = vadd.f32 %v420, %v447
        %v451 = vadd.f32 %v421, %v443
        %s452 = scalar_lea.vmem %s1, 32
        %v453 = vld [vmem:[%s452] sm:$0xf]
        %455 = vset.pattern.permute.xlu0 0
        %456 = vperm.xlu0 %455, %v453
        %v457 = vpop.permute.xlu0 %456
        %v459 = vunpack.c.l.s4 839922192
        %v460 = vunpack.c.0.s8 %v459
        %v461 = vlaneseq
        %v462 = vshrl.u32 %v461, 7
        %v463 = vsub.s32 %v460, %v462
        %v464 = vrot.slane %v457, %v463
        %v466 = vmul.f32 %v269, %v464
        %v467 = vmul.f32 %v270, %v464
        %470 = vrot.lane.b32.xlu0 %v466, 96
        %v471 = vpop.permute.xlu0 %470
        %472 = vrot.lane.b32.xlu0 %v467, 96
        %v473 = vpop.permute.xlu0 %472
        %v474 = vrot.slane %v471, 4
        %v475 = vrot.slane %v473, 4
        %v476 = vsel %vm295, %v474, %v475
        %v477 = vsel %vm326, %v471, %v476
        %v480 = vadd.f32 %v450, %v477
        %v481 = vadd.f32 %v451, %v473
        %v482 = vsel %vm250, 1, 0
        %v483 = vsel %vm251, 1, 0
        %vm484 = vcmp.eq.s32.totalorder %v482, 1
        %vm485 = vcmp.eq.s32.totalorder %v483, 1
        %v487 = vcombine.high %v329, %v329
        %v489 = vsel %vm484, %v329, 0.0
        %v490 = vsel %vm485, %v487, 0.0
        %v493 = vcombine.high %v404, %v404
        %494 = vrot.lane.b32.xlu0 %v404, 127
        %v495 = vpop.permute.xlu0 %494
        %496 = vrot.lane.b32.xlu0 %v493, 127
        %v497 = vpop.permute.xlu0 %496
        %498 = vrot.lane.b32.xlu0 %v405, 127
        %v499 = vpop.permute.xlu0 %498
        %vm500 = vcmask 1039360
        %v501 = vsel %vm500, %v495, %v497
        %v502 = vsel %vm500, %v497, %v499
        %v505 = vadd.f32 %v489, %v501
        %v506 = vadd.f32 %v490, %v502
        %v507 = vsel %vm252, 1, 0
        %v508 = vsel %vm253, 1, 0
        %vm509 = vcmp.eq.s32.totalorder %v507, 1
        %vm510 = vcmp.eq.s32.totalorder %v508, 1
        %v513 = vcombine.high %v480, %v480
        %514 = vrot.lane.b32.xlu0 %v480, 126
        %v515 = vpop.permute.xlu0 %514
        %516 = vrot.lane.b32.xlu0 %v513, 126
        %v517 = vpop.permute.xlu0 %516
        %518 = vrot.lane.b32.xlu0 %v481, 126
        %v519 = vpop.permute.xlu0 %518
        %vm520 = vcmask 1031168
        %v521 = vsel %vm520, %v515, %v517
        %v522 = vsel %vm520, %v517, %v519
        %v525 = vsel %vm509, %v521, 0.0
        %v526 = vsel %vm510, %v522, 0.0
        %v527 = vadd.f32 %v505, %v525
        %v528 = vadd.f32 %v506, %v526
        %v529 = vld [vmem:[%s2] sm:$0xf]
        %531 = vset.pattern.permute.xlu0 0
        %532 = vperm.xlu0 %531, %v529
        %v533 = vpop.permute.xlu0 %532
        %v535 = vadd.f32 %v527, %v533
        %v536 = vadd.f32 %v528, %v533
        %v537 = vmax.f32 %v535, 0.0
        %v538 = vmax.f32 %v536, 0.0
        %v539 = vld [vmem:[%s3] sm:$0xff]
        %541 = vset.pattern.permute.xlu0 0
        %542 = vperm.xlu0 %541, %v539
        %v543 = vpop.permute.xlu0 %542
        %v545 = vlaneseq
        %v546 = vshrl.u32 %v545, 7
        %v547 = vsub.s32 0, %v546
        %v548 = vrot.slane %v537, %v547
        %v549 = vlaneseq
        %v550 = vshrl.u32 %v549, 7
        %v551 = vsub.s32 0, %v550
        %v552 = vrot.slane %v538, %v551
        %v553 = vmul.f32 %v543, %v548
        %v554 = vmul.f32 %v543, %v552
        %555 = vset.pattern.permute.xlu0 1
        %556 = vperm.xlu0 %555, %v539
        %v557 = vpop.permute.xlu0 %556
        %v559 = vlaneseq
        %v560 = vshrl.u32 %v559, 7
        %v561 = vsub.s32 1, %v560
        %v562 = vrot.slane %v537, %v561
        %v563 = vlaneseq
        %v564 = vshrl.u32 %v563, 7
        %v565 = vsub.s32 1, %v564
        %v566 = vrot.slane %v538, %v565
        %v567 = vmul.f32 %v557, %v562
        %v568 = vmul.f32 %v557, %v566
        %v569 = vadd.f32 %v553, %v567
        %v570 = vadd.f32 %v554, %v568
        %571 = vset.pattern.permute.xlu0 2
        %572 = vperm.xlu0 %571, %v539
        %v573 = vpop.permute.xlu0 %572
        %v575 = vlaneseq
        %v576 = vshrl.u32 %v575, 7
        %v577 = vsub.s32 2, %v576
        %v578 = vrot.slane %v537, %v577
        %v579 = vlaneseq
        %v580 = vshrl.u32 %v579, 7
        %v581 = vsub.s32 2, %v580
        %v582 = vrot.slane %v538, %v581
        %v583 = vmul.f32 %v573, %v578
        %v584 = vmul.f32 %v573, %v582
        %v585 = vadd.f32 %v569, %v583
        %v586 = vadd.f32 %v570, %v584
        %587 = vset.pattern.permute.xlu0 3
        %588 = vperm.xlu0 %587, %v539
        %v589 = vpop.permute.xlu0 %588
        %v591 = vlaneseq
        %v592 = vshrl.u32 %v591, 7
        %v593 = vsub.s32 3, %v592
        %v594 = vrot.slane %v537, %v593
        %v595 = vlaneseq
        %v596 = vshrl.u32 %v595, 7
        %v597 = vsub.s32 3, %v596
        %v598 = vrot.slane %v538, %v597
        %v599 = vmul.f32 %v589, %v594
        %v600 = vmul.f32 %v589, %v598
        %v601 = vadd.f32 %v585, %v599
        %v602 = vadd.f32 %v586, %v600
        %v603 = vld [vmem:[%s4] sm:$0xff]
        %605 = vset.pattern.permute.xlu0 0
        %606 = vperm.xlu0 %605, %v603
        %v607 = vpop.permute.xlu0 %606
        %v609 = vadd.f32 %v601, %v607
        %v610 = vadd.f32 %v602, %v607
        %v611 = vmax.f32 %v609, 0.0
        %v612 = vmax.f32 %v610, 0.0
        %613 = vst [vmem:[%s217] sm:$0xff] %v611
        %614 = vst [vmem:[%s217 + $0x8] sm:$0xff] %v612
        %s615 = sand.u32 %s137, 1
        %s616 = scalar_lea.sflag [#allocation3], %s615
        %s617 = sand.u32 %s137, 1
        %s618 = smul.addr %s617, 16
        %s619 = scalar_lea.vmem [#allocation2], %s618
        // Predicated region
        $region41: #{tpu_custom_call.1} parent=39 // pred_check
          %p620 = pneg %p147
        $region42: #{tpu_custom_call.1} parent=39 // pred_check_branch
          %622 = sbr.rel (%p620) target = $region44
        $region43: #{tpu_custom_call.1} parent=39 // pred_region
          %s624 = ssub.s32 256, 256
          %625 = vsyncadd %s616, %s624
          %s626 = smul.addr %s19, 2
          %s627 = smul.addr %s626, 128
          %s628 = scalar_lea.hbm %s5, %s627
          %s630 = sshll.u32 %s619, 4
          %s631 = int_to_ptr.vmem [resolvable:$true] %s630
          %633 = dma.vmem_to_hbm [thread:$0]  %s631, 256, %s628, %s616
        $region44: #{tpu_custom_call.1} parent=39 // pred_fallthru
          _
      $region40: #{tpu_custom_call.1} parent=5 // pred_fallthru
        _
      %p634 = scmp.le.s32.totalorder 2, %s14
      // Predicated region
      $region45: #{tpu_custom_call.1} parent=5 // pred_check
        %p635 = pneg %p634
      $region46: #{tpu_custom_call.1} parent=5 // pred_check_branch
        %637 = sbr.rel (%p635) target = $region48
      $region47: #{tpu_custom_call.1} parent=5 // pred_region
        %s638 = ssub.s32 %s14, 2
        // Predicated region
        $region49: #{tpu_custom_call.1} parent=47 // pred_check
          %p639 = pneg %p153
        $region50: #{tpu_custom_call.1} parent=47 // pred_check_branch
          %641 = sbr.rel (%p639) target = $region52
        $region51: #{tpu_custom_call.1} parent=47 // pred_region
          %s642 = sand.u32 %s138, 1
          %s643 = scalar_lea.sflag [#allocation3], %s642
          %s644 = sand.u32 %s138, 1
          %s645 = smul.addr %s644, 16
          %s646 = scalar_lea.vmem [#allocation2], %s645
          %647 = dma.done %s643, 256
        $region52: #{tpu_custom_call.1} parent=47 // pred_fallthru
          _
      $region48: #{tpu_custom_call.1} parent=5 // pred_fallthru
        _
    $region6: #{tpu_custom_call.1} parent=1 // loop_footer
      %s18 = sadd.s32 1, %s14
    $region7: #{tpu_custom_call.1} parent=1 // loop_footer_branch
      %13 = sbr.rel target = $region3
    $region8: #{tpu_custom_call.1} parent=1 // loop_exit
      _
    %648 = vsyncpa [#allocation3], 1
    %s649 = scalar_lea.sflag [#allocation3], 1
    %650 = vsyncpa %s649, 1

</llo_original>
